<compile_context>
chip_gen: v7x
topology: tpu7x:2x2x1
jax: 0.10.0
libtpu: 0.0.40
codegen_flags: <defaults>
</compile_context>

<pallas_src>
import math

import jax
import jax.numpy as jnp
from jax.experimental import pallas as pl
from jax.experimental.pallas import tpu as pltpu

_LANE = 128
_SUBLANE = 8
_MAX_COLS = 2048                        # slab width cap (keeps rows chunkable)
_TARGET_CHUNK_BYTES = 8 * 1024 * 1024   # per-DMA chunk size target
_MAX_INFLIGHT = 4                       # DMAs kept in flight round-robin
_MAX_CHUNKS = 32                        # bound on the (fully unrolled) descriptor loop


def _round_up(n, m):
    return -(-n // m) * m


def _sublane_pack(dtype):
    """Rows per native sublane tile: 8 for 4-byte, 16 for 2-byte, 32 for 1-byte."""
    itemsize = jnp.dtype(dtype).itemsize
    return _SUBLANE * max(1, 4 // itemsize)


def _pick_2d(total, pack):
    """Lane-dense (rows, cols) factorization of `total` (cols % 128 == 0)."""
    best = None
    c = min(_MAX_COLS, (total // _LANE) * _LANE)
    while c >= _LANE:
        if total % c == 0:
            r = total // c
            if r >= pack:
                return r, c            # lane-dense AND a whole number of sublane tiles
            if best is None:
                best = (r, c)          # lane-dense but sublane-short (fine for DMA)
        c -= _LANE
    return best


def _plan_chunks(rows, pack, row_bytes):
    """Static row-chunk plan: (starts, sizes); chunk starts aligned to `pack`."""
    target = max(pack, (_TARGET_CHUNK_BYTES // max(1, row_bytes)) // pack * pack)
    if rows >= 2 * pack:
        # At least 2 chunks so >=2 DMAs can be in flight (overlaps descriptor
        # issue latency; lets extra DMA queues / v7x's second core help).
        target = min(target, _round_up(max(1, rows // 2), pack))
    # Keep the unrolled descriptor loop short for very large arrays.
    target = max(target, _round_up(_round_up(rows, _MAX_CHUNKS) // _MAX_CHUNKS, pack))
    if target >= rows:
        return [0], [rows]
    starts, sizes = [], []
    r = 0
    while r < rows:
        s = min(target, rows - r)
        starts.append(r)
        sizes.append(s)
        r += s
    # Fold a tiny ragged tail into the previous chunk: one fewer descriptor,
    # no short inefficient DMA, no load imbalance.
    if len(sizes) >= 2 and sizes[-1] < pack:
        sizes[-2] += sizes[-1]
        starts.pop()
        sizes.pop()
    return starts, sizes


def _make_hbm_copy_kernel(starts, sizes, k_inflight):
    """Kernel body: one HBM->HBM DMA per chunk, <= k_inflight kept in flight."""
    n = len(starts)

    def kernel(x_ref, o_ref, sems):
        if n == 1:
            cp = pltpu.make_async_copy(x_ref, o_ref, sems.at[0])
            cp.start()
            cp.wait()
            return
        copies = []
        for j in range(n):
            if j >= k_inflight:
                copies[j - k_inflight].wait()      # free this semaphore slot
            cp = pltpu.make_async_copy(
                x_ref.at[pl.ds(starts[j], sizes[j]), :],
                o_ref.at[pl.ds(starts[j], sizes[j]), :],
                sems.at[j % k_inflight],
            )
            cp.start()
            copies.append(cp)
        for j in range(max(0, n - k_inflight), n):
            copies[j].wait()

    return kernel


def _pallas_copy_2d(flat2d):
    rows, cols = flat2d.shape
    itemsize = flat2d.dtype.itemsize
    pack = _sublane_pack(flat2d.dtype)
    starts, sizes = _plan_chunks(rows, pack, cols * itemsize)
    k = max(1, min(_MAX_INFLIGHT, len(starts)))
    return pl.pallas_call(
        _make_hbm_copy_kernel(starts, sizes, k),
        out_shape=jax.ShapeDtypeStruct((rows, cols), flat2d.dtype),
        in_specs=[pl.BlockSpec(memory_space=pl.ANY)],   # raw HBM ref, no auto-DMA
        out_specs=pl.BlockSpec(memory_space=pl.ANY),    # written directly by DMA
        scratch_shapes=[pltpu.SemaphoreType.DMA((k,))],
        cost_estimate=pl.CostEstimate(
            flops=0,
            transcendentals=0,
            bytes_accessed=2 * rows * cols * itemsize,
        ),
    )(flat2d)


def _materializing_reshape(x, target_shape):
    """Explicit HBM->HBM copy landing in `target_shape`."""
    total = math.prod(x.shape)
    if total == 0:
        return jnp.reshape(x, target_shape)
    pack = _sublane_pack(x.dtype)
    if len(target_shape) == 2 and target_shape[-1] % _LANE == 0:
        rows, cols = target_shape              # target is already a lane-dense slab
    else:
        rc = _pick_2d(total, pack)
        if rc is None:
            rc = (1, total)                    # odd size: one whole-array DMA
        rows, cols = rc
    # Wrapper-side reshapes are layout plumbing; the kernel only sees a 2D slab.
    flat2d = jnp.reshape(x, (rows, cols))
    out2d = _pallas_copy_2d(flat2d)
    return jnp.reshape(out2d, target_shape)


class Reshape:
    """JAX/Pallas port of the PyTorch `Reshape` module.

    forward(x):
      - shape == ()    -> x.reshape(x.shape[0], -1)
      - shape == (-1,) -> x.reshape(-1)
      - else           -> x.reshape(x.shape[0], *shape)

    `materialize=False` is the recommended free path (metadata-only reshape);
    `materialize=True` (default here so the Pallas kernel is exercised) does an
    explicit HBM->HBM DMA copy of the data.
    """

    def __init__(self, *shape, materialize=True):
        self.shape = shape
        self.materialize = materialize

    def _target_shape(self, x):
        if x.ndim == 0:
            raise ValueError("Reshape expects an input with a batch dimension.")
        bs = x.shape[0]
        total = math.prod(x.shape)
        if not self.shape:
            return (bs, total // bs)
        if self.shape == (-1,):
            return (total,)
        dims = [bs, *self.shape]
        if any(d == -1 for d in dims[1:]):
            known = math.prod(d for d in dims if d != -1)
            dims = [total // known if d == -1 else d for d in dims]
        return tuple(dims)

    def __call__(self, x):
        target = self._target_shape(x)
        if not self.materialize:
            # Reshape of a contiguous array: metadata-only in XLA, no kernel.
            return jnp.reshape(x, target)
        return _materializing_reshape(x, target)

    def __repr__(self):
        return (
            f"{self.__class__.__name__}"
            f"({', '.join(['bs'] + [str(s) for s in self.shape])})"
        )


if __name__ == "__main__":
    key = jax.random.PRNGKey(0)
    # Small NCHW input consistent with the module's usage.
    x = jax.random.normal(key, (2, 4, 16, 16), dtype=jnp.float32)

    # Case 1: default — flatten all but batch dim.  Target (2, 1024) is already
    # lane-dense, so the kernel DMA-copies that slab directly (single DMA).
    y1 = Reshape()(x)
    jax.block_until_ready(y1)
    assert y1.shape == (2, 4 * 16 * 16)
    assert jnp.array_equal(y1, x.reshape(2, -1))

    # Case 2: full flatten — slab is (8, 256), single whole-slab DMA.
    y2 = Reshape(-1)(x)
    jax.block_until_ready(y2)
    assert y2.shape == (2 * 4 * 16 * 16,)
    assert jnp.array_equal(y2, x.reshape(-1))

    # Case 3: explicit trailing shape (bs, 16, 64).
    y3 = Reshape(16, 64)(x)
    jax.block_until_ready(y3)
    assert y3.shape == (2, 16, 64)
    assert jnp.array_equal(y3, x.reshape(2, 16, 64))

    # Case 4: bf16 full flatten — slab (32, 2048), 16-row packing, two chunks,
    # exercising the multi-DMA round-robin path.
    xb = jax.random.normal(jax.random.PRNGKey(1), (2, 32, 32, 32), dtype=jnp.bfloat16)
    y4 = Reshape(-1)(xb)
    jax.block_until_ready(y4)
    assert y4.shape == (2 * 32 * 32 * 32,)
    assert jnp.array_equal(y4, xb.reshape(-1))

    # Case 5: odd sizes with no multiple-of-128 factorization (fallback slab).
    xo = jax.random.normal(jax.random.PRNGKey(2), (3, 5, 7, 9), dtype=jnp.float32)
    y5 = Reshape()(xo)
    jax.block_until_ready(y5)
    assert y5.shape == (3, 5 * 7 * 9)
    assert jnp.array_equal(y5, xo.reshape(3, -1))

    # Metadata-only fast path (no kernel) matches the materialized result.
    y1_meta = Reshape(materialize=False)(x)
    jax.block_until_ready(y1_meta)
    assert y1_meta.shape == y1.shape
    assert jnp.array_equal(y1_meta, y1)

    print("KERNEL_OK")
</pallas_src>

<mosaic_0001>
module attributes {stable_mosaic.version = 11 : i64} {
  func.func @kernel(%arg0: memref<2x1024xf32, #tpu.memory_space<any>>, %arg1: memref<2x1024xf32, #tpu.memory_space<any>>, %arg2: memref<1x!tpu.dma_semaphore, #tpu.memory_space<semaphore_mem>>) attributes {dimension_semantics = [], scalar_prefetch = 0 : i64, scratch_operands = 1 : i64, tpu.core_type = #tpu.core_type<tc>} {
    %c0_i32 = arith.constant 0 : i32
    %0 = tpu.memref_slice %arg2[%c0_i32] : memref<1x!tpu.dma_semaphore, #tpu.memory_space<semaphore_mem>> -> memref<1x!tpu.dma_semaphore, #tpu.memory_space<semaphore_mem>>
    %1 = tpu.memref_squeeze %0 : memref<1x!tpu.dma_semaphore, #tpu.memory_space<semaphore_mem>> -> memref<!tpu.dma_semaphore, #tpu.memory_space<semaphore_mem>>
    tpu.enqueue_dma source(%arg0 : memref<2x1024xf32, #tpu.memory_space<any>>) target(%arg1 : memref<2x1024xf32, #tpu.memory_space<any>>) target_semaphore(%1 : memref<!tpu.dma_semaphore, #tpu.memory_space<semaphore_mem>>)
    %c0_i32_0 = arith.constant 0 : i32
    %2 = tpu.memref_slice %arg2[%c0_i32_0] : memref<1x!tpu.dma_semaphore, #tpu.memory_space<semaphore_mem>> -> memref<1x!tpu.dma_semaphore, #tpu.memory_space<semaphore_mem>>
    %3 = tpu.memref_squeeze %2 : memref<1x!tpu.dma_semaphore, #tpu.memory_space<semaphore_mem>> -> memref<!tpu.dma_semaphore, #tpu.memory_space<semaphore_mem>>
    tpu.wait_dma2 semaphore(%3 : memref<!tpu.dma_semaphore, #tpu.memory_space<semaphore_mem>>) src(%arg0 : memref<2x1024xf32, #tpu.memory_space<any>>) dst(%arg1 : memref<2x1024xf32, #tpu.memory_space<any>>)
    return
  }
}

</mosaic_0001>

<llo_original>
// kernel: tpu_custom_call.1
$region0: #{tpu_custom_call.1}
  #allocation0 [shape = 'u32[]', space=smem, size = 0x4, offset = 0x4, fixed_abs, tag = 'smem constant byte address 0x4 - core index']
  #allocation1 [shape = 'u32[144,128]{1,0:T(1,128)}', space=vmem, size = 0x12000, scoped, tag = 'internal scratch']
  #allocation2 [shape = 's32[1]{0}', space=sflag, size = 0x4, scoped, tag = 'scratch operand']
  #allocation3 [shape = 's32[]', space=sflag, size = 0x4, offset = 0, fixed_abs, tag = 'sflag constant byte address 0x0 - dummy sync flag']
  #allocation4 [shape = 'u32[0]{0}', space=smem, size = 0, offset = 0, fixed_abs, tag = 'smem constant byte address 0x0 - null']
  %s0 = inlined_call_operand.hbm [shape: f32[2,1024], index: 0, kind: input, shape index: {}]
  %s1 = inlined_call_operand.hbm [shape: f32[2,1024], index: 1, kind: output, shape index: {}]
  %s2 = sld [smem:[#allocation0]]
  $region2: #{tpu_custom_call.1} parent=0
    _
  %s4 = ssub.s32 1, %s2
  %s5 = scalar_select 0, %s4, %s2
  %s7 = sshll.u32 1, 14
  %s8 = sxor.u32 4294967295, %s7
  %s11 = sshll.u32 3, 24
  %s12 = sxor.u32 4294967295, %s11
  %s13 = sand.u32 0, %s12
  %s15 = sor.u32 %s13, 0
  %18 = dma.general %s0, 256, %s1, [#allocation2], [#allocation3], [#allocation4], %s15, 0
  %s19 = smul.u32 2, 1
  %s20 = smul.u32 %s19, 8
  %s21 = sshll.u32 %s20, 4
  %22 = dma.done [#allocation2], %s21
  %23 = vsyncmov [#allocation2]
  %s24 = vpop.sfrf %23
  %p25 = scmp.eq.s32.totalorder %s24, 0
  %p26 = pneg %p25
  %28 = shalt.err (%p26)

</llo_original>
